<compile_context>
chip_gen: v6e
topology: v6e:2x2x1
jax: 0.10.0
libtpu: 0.0.40
codegen_flags: <defaults>
</compile_context>

<pallas_src>
import math

import jax
import jax.numpy as jnp
from jax.experimental import pallas as pl
from jax.experimental.pallas import tpu as pltpu


_U8_MAX = 255.0    # max value of the input integer dtype (uint8)
_LANE = 128        # TPU lane width
_U8_SUBLANE = 32   # native uint8 sublane tile


def _convert_kernel(x_ref, o_ref):
    # Bit-exact torchvision semantics: image.to(float32) / 255.0.
    # HBM-bandwidth-bound on every generation, so the divide is hidden.
    o_ref[...] = x_ref[...].astype(jnp.float32) / _U8_MAX


def _round_up(n, m):
    return ((n + m - 1) // m) * m


def _pick_divisor_cols(total, block_cols):
    """Largest multiple of 128 <= block_cols that exactly divides `total`."""
    c = min(block_cols, (total // _LANE) * _LANE)
    while c >= _LANE:
        if total % c == 0:
            return c
        c -= _LANE
    return None


def convert_image_dtype(image_u8, target=None, *, block_rows=1024, block_cols=2048):
    """uint8 image (any shape) -> float32 image in [0, 1]; target passed through."""
    assert image_u8.dtype == jnp.uint8
    orig_shape = image_u8.shape
    total = math.prod(orig_shape)
    flat = image_u8.reshape(total)

    # --- Lane width -----------------------------------------------------------
    # Preferred: a large multiple of 128 that exactly divides the element count
    # so neither padding nor an output slice is needed (e.g. 1792 for 3x224x224,
    # 2048 for 3x1280x1280).  Fallback: pad the flat array by < cols elements.
    cols = _pick_divisor_cols(total, block_cols)
    if cols is not None:
        rows = total // cols
        padded = total
    else:
        cols = min(block_cols, _round_up(total, _LANE))
        rows = (total + cols - 1) // cols
        padded = rows * cols
        flat = jnp.pad(flat, (0, padded - total))
    x2d = flat.reshape(rows, cols)

    # --- Row tile -------------------------------------------------------------
    # Partial edge block (rows % tr != 0) is handled by Pallas masking: the
    # over-hang loads are garbage but the matching stores are dropped, which is
    # safe for this purely elementwise op (no intra-block reduction).
    if rows >= block_rows:
        tr = block_rows
    elif rows >= 64:
        # Mid-size image: split into >= 2 row blocks (multiple of the u8
        # sublane tile) so both v7x TensorCores get work under "parallel".
        tr = _round_up((rows + 1) // 2, _U8_SUBLANE)
    else:
        # Tiny image: single full-extent block (always a legal block shape).
        tr = rows

    num_blocks = (rows + tr - 1) // tr
    grid = (num_blocks,)

    # Deeper buffering on the input side only (1/4 the bytes of the output):
    # hides HBM read-latency jitter for ~2 MiB extra VMEM.
    in_spec_kwargs = {}
    if num_blocks >= 3:
        in_spec_kwargs["pipeline_mode"] = pl.Buffered(3)
    in_spec = pl.BlockSpec((tr, cols), lambda i: (i, 0), **in_spec_kwargs)
    out_spec = pl.BlockSpec((tr, cols), lambda i: (i, 0))

    out2d = pl.pallas_call(
        _convert_kernel,
        out_shape=jax.ShapeDtypeStruct((rows, cols), jnp.float32),
        grid_spec=pltpu.PrefetchScalarGridSpec(
            num_scalar_prefetch=0,
            grid=grid,
            in_specs=[in_spec],
            out_specs=out_spec,
        ),
        compiler_params=pltpu.CompilerParams(
            dimension_semantics=("parallel",),
            # Peak working set ~22 MiB (3x2 MiB u8 in + 2x8 MiB f32 out);
            # 40 MiB gives headroom while staying well inside v7x's 64 MiB
            # physical VMEM (128 MiB on v5e/v6e).
            vmem_limit_bytes=40 * 1024 * 1024,
        ),
    )(x2d)

    if padded != total:
        out_flat = out2d.reshape(padded)[:total]
    else:
        out_flat = out2d.reshape(total)
    return out_flat.reshape(orig_shape), target


def _reference(image_u8):
    return image_u8.astype(jnp.float32) / 255.0


if __name__ == "__main__":
    key = jax.random.PRNGKey(0)

    def _rand_u8(k, shape):
        return jax.random.randint(
            k, shape, minval=0, maxval=256, dtype=jnp.int32
        ).astype(jnp.uint8)

    # 1) Canonical small NCHW batch (pad-free divisor path, single tiny block).
    img = _rand_u8(key, (2, 4, 16, 16))
    out, tgt = convert_image_dtype(img, target=None)
    out = jax.block_until_ready(out)
    assert out.shape == (2, 4, 16, 16) and out.dtype == jnp.float32 and tgt is None
    assert bool(jnp.allclose(out, _reference(img), atol=0.0, rtol=0.0))

    k1, k2, k3 = jax.random.split(key, 3)

    # 2) Ragged shape (no multiple of 128 divides it): padding fallback path.
    img2 = _rand_u8(k1, (1, 3, 7, 9))
    out2, _ = convert_image_dtype(img2)
    out2 = jax.block_until_ready(out2)
    assert bool(jnp.allclose(out2, _reference(img2), atol=0.0, rtol=0.0))

    # 3) Mid-size CHW image: pad-free (cols=1792 divides 3*224*224), two
    #    parallel row blocks with a masked partial edge block.
    img3 = _rand_u8(k2, (3, 224, 224))
    out3, _ = convert_image_dtype(img3)
    out3 = jax.block_until_ready(out3)
    assert bool(jnp.allclose(out3, _reference(img3), atol=0.0, rtol=0.0))

    # 4) Large image: 1024-row tiles, grid=3 (exercises the Buffered(3) input
    #    pipeline and the masked partial edge block), no padding / slicing.
    img4 = _rand_u8(k3, (3, 1280, 1280))
    out4, _ = convert_image_dtype(img4)
    out4 = jax.block_until_ready(out4)
    assert bool(jnp.allclose(out4, _reference(img4), atol=0.0, rtol=0.0))

    print("KERNEL_OK")
</pallas_src>

<mosaic_0001>
module attributes {stable_mosaic.version = 11 : i64} {
  func.func @_convert_kernel(%arg0: i32, %arg1: memref<1x2048xi8, #tpu.memory_space<vmem>>, %arg2: memref<1x2048xf32, #tpu.memory_space<vmem>>) attributes {dimension_semantics = [#tpu.dimension_semantics<parallel>], iteration_bounds = array<i64: 1>, scalar_prefetch = 0 : i64, scratch_operands = 0 : i64, tpu.core_type = #tpu.core_type<tc>, window_params = [{transform_indices = @transform_0, window_bounds = array<i64: 1, 2048>}, {transform_indices = @transform_1, window_bounds = array<i64: 1, 2048>}]} {
    %c0 = arith.constant 0 : index
    %c0_0 = arith.constant 0 : index
    %0 = vector.load %arg1[%c0, %c0_0] : memref<1x2048xi8, #tpu.memory_space<vmem>>, vector<1x2048xi8>
    %1 = arith.uitofp %0 : vector<1x2048xi8> to vector<1x2048xf32>
    %cst = arith.constant 2.550000e+02 : f32
    %2 = vector.broadcast %cst : f32 to vector<1x2048xf32>
    %3 = arith.divf %1, %2 : vector<1x2048xf32>
    %c0_1 = arith.constant 0 : index
    %c0_2 = arith.constant 0 : index
    %4 = vector.load %arg2[%c0_1, %c0_2] : memref<1x2048xf32, #tpu.memory_space<vmem>>, vector<1x2048xf32>
    tpu.vector_store %arg2[%c0_1, %c0_2], %3 {strides = array<i32>} : memref<1x2048xf32, #tpu.memory_space<vmem>>, vector<1x2048xf32>,
    return
  }
  func.func @transform_0(%arg0: i32) -> (i32, i32) {
    %c0_i32 = arith.constant 0 : i32
    %c0_i32_0 = arith.constant 0 : i32
    return %arg0, %c0_i32 : i32, i32
  }
  func.func @transform_1(%arg0: i32) -> (i32, i32) {
    %c0_i32 = arith.constant 0 : i32
    %c0_i32_0 = arith.constant 0 : i32
    return %arg0, %c0_i32 : i32, i32
  }
}

</mosaic_0001>

<llo_original>
// kernel: tpu_custom_call.1
$region0: #{tpu_custom_call.1}
  #allocation0 [shape = 'u32[]', space=smem, size = 0x4, offset = 0x4, fixed_abs, tag = 'smem constant byte address 0x4 - core index']
  #allocation1 [shape = 'u32[144,128]{1,0:T(1,128)}', space=vmem, size = 0x12000, scoped, tag = 'internal scratch']
  %s0 = inlined_call_operand.hbm [shape: u8[1,2048], index: 0, kind: input, shape index: {}]
  %s1 = inlined_call_operand.hbm [shape: f32[1,2048], index: 1, kind: output, shape index: {}]
  %s2 = sld [smem:[#allocation0]]
  $region18: #{tpu_custom_call.1} parent=0
    _
  %s4 = ssub.s32 1, %s2
  %s5 = scalar_select 0, %s4, %s2
  $region1: #{tpu_custom_call.1} parent=0
    #allocation2 [shape = 'u8[8192]{0}', space=vmem, size = 0x2000, scoped, tag = 'input window, operand 0, single buffered']
    #allocation3 [shape = 's32[1]{0}', space=sflag, size = 0x4, scoped, tag = 'scoped memory for tpu_custom_call.1']
    #allocation4 [shape = 's32[1]{0}', space=sflag, size = 0x4, scoped, tag = 'scoped memory for tpu_custom_call.1']
    #allocation5 [shape = 'u8[8192]{0}', space=vmem, size = 0x2000, scoped, tag = 'output window, operand 0, single buffered']
    %6 = vsyncpa [#allocation3], 0
    %7 = vsyncpa [#allocation4], 0
    // Predicated region
    $region2: #{tpu_custom_call.1} parent=1 // pred_check
      _
    $region3: #{tpu_custom_call.1} parent=1 // pred_check_branch
      %9 = sbr.rel (0) target = $region5
    $region4: #{tpu_custom_call.1} parent=1 // pred_region
      %s11 = ssub.s32 256, 256
      %12 = vsyncadd [#allocation3], %s11
      %s14 = sshll.u32 [#allocation2], 4
      %s15 = int_to_ptr.vmem [resolvable:$true] %s14
      %17 = dma.hbm_to_vmem [thread:$0]  %s0, 256, %s15, [#allocation3]
    $region5: #{tpu_custom_call.1} parent=1 // pred_fallthru
      _
    // Predicated region
    $region6: #{tpu_custom_call.1} parent=1 // pred_check
      _
    $region7: #{tpu_custom_call.1} parent=1 // pred_check_branch
      %19 = sbr.rel (0) target = $region9
    $region8: #{tpu_custom_call.1} parent=1 // pred_region
      %20 = dma.done [#allocation3], 256
    $region9: #{tpu_custom_call.1} parent=1 // pred_fallthru
      _
    %v21 = vld [vmem:[#allocation2] sm:$0xff]
    %v22 = vld [vmem:[#allocation2 + $0x8] sm:$0xff]
    %v23 = vunpack.c.0.s8 %v21
    %v24 = vunpack.c.1.s8 %v21
    %v25 = vunpack.c.2.s8 %v21
    %v26 = vunpack.c.3.s8 %v21
    %v27 = vunpack.c.0.s8 %v22
    %v28 = vunpack.c.1.s8 %v22
    %v29 = vunpack.c.2.s8 %v22
    %v30 = vunpack.c.3.s8 %v22
    %v31 = vand.u32 %v23, 255
    %v32 = vand.u32 %v24, 255
    %v33 = vand.u32 %v25, 255
    %v34 = vand.u32 %v26, 255
    %v35 = vand.u32 %v27, 255
    %v36 = vand.u32 %v28, 255
    %v37 = vand.u32 %v29, 255
    %v38 = vand.u32 %v30, 255
    %v39 = vcvt.s32.f32 %v31
    %v40 = vcvt.s32.f32 %v32
    %v41 = vcvt.s32.f32 %v33
    %v42 = vcvt.s32.f32 %v34
    %v43 = vcvt.s32.f32 %v35
    %v44 = vcvt.s32.f32 %v36
    %v45 = vcvt.s32.f32 %v37
    %v46 = vcvt.s32.f32 %v38
    %v47 = vrcp.pop 255.0
    %v48 = vmul.f32 %v39, %v47
    %v49 = vmul.f32 %v40, %v47
    %v50 = vmul.f32 %v41, %v47
    %v51 = vmul.f32 %v42, %v47
    %v52 = vmul.f32 %v43, %v47
    %v53 = vmul.f32 %v44, %v47
    %v54 = vmul.f32 %v45, %v47
    %v55 = vmul.f32 %v46, %v47
    %v65 = vunpack.c.l.s4 1966171168
    %v66 = vunpack.c.0.s8 %v65
    %v67 = vlaneseq
    %v68 = vshrl.u32 %v67, 7
    %v69 = vsub.s32 %v66, %v68
    %v70 = vrot.slane %v48, %v69
    %v72 = vunpack.c.l.s4 1966171168
    %v73 = vunpack.c.0.s8 %v72
    %v74 = vlaneseq
    %v75 = vshrl.u32 %v74, 7
    %v76 = vsub.s32 %v73, %v75
    %v77 = vrot.slane %v49, %v76
    %v79 = vunpack.c.l.s4 1966171168
    %v80 = vunpack.c.0.s8 %v79
    %v81 = vlaneseq
    %v82 = vshrl.u32 %v81, 7
    %v83 = vsub.s32 %v80, %v82
    %v84 = vrot.slane %v50, %v83
    %v86 = vunpack.c.l.s4 1966171168
    %v87 = vunpack.c.0.s8 %v86
    %v88 = vlaneseq
    %v89 = vshrl.u32 %v88, 7
    %v90 = vsub.s32 %v87, %v89
    %v91 = vrot.slane %v51, %v90
    %v92 = vcombine.low %v70, %v77
    %v93 = vcombine.low %v84, %v91
    %v95 = vunpack.c.l.s4 1966171168
    %v96 = vunpack.c.0.s8 %v95
    %v97 = vlaneseq
    %v98 = vshrl.u32 %v97, 7
    %v99 = vsub.s32 %v96, %v98
    %v100 = vrot.slane %v92, %v99
    %v102 = vunpack.c.l.s4 1966171168
    %v103 = vunpack.c.0.s8 %v102
    %v104 = vlaneseq
    %v105 = vshrl.u32 %v104, 7
    %v106 = vsub.s32 %v103, %v105
    %v107 = vrot.slane %v93, %v106
    %v108 = vcombine.low %v100, %v107
    %v110 = vunpack.c.l.s4 1966171168
    %v111 = vunpack.c.0.s8 %v110
    %v112 = vlaneseq
    %v113 = vshrl.u32 %v112, 7
    %v114 = vsub.s32 %v111, %v113
    %v115 = vrot.slane %v52, %v114
    %v117 = vunpack.c.l.s4 1966171168
    %v118 = vunpack.c.0.s8 %v117
    %v119 = vlaneseq
    %v120 = vshrl.u32 %v119, 7
    %v121 = vsub.s32 %v118, %v120
    %v122 = vrot.slane %v53, %v121
    %v124 = vunpack.c.l.s4 1966171168
    %v125 = vunpack.c.0.s8 %v124
    %v126 = vlaneseq
    %v127 = vshrl.u32 %v126, 7
    %v128 = vsub.s32 %v125, %v127
    %v129 = vrot.slane %v54, %v128
    %v131 = vunpack.c.l.s4 1966171168
    %v132 = vunpack.c.0.s8 %v131
    %v133 = vlaneseq
    %v134 = vshrl.u32 %v133, 7
    %v135 = vsub.s32 %v132, %v134
    %v136 = vrot.slane %v55, %v135
    %v137 = vcombine.low %v115, %v122
    %v138 = vcombine.low %v129, %v136
    %v140 = vunpack.c.l.s4 1966171168
    %v141 = vunpack.c.0.s8 %v140
    %v142 = vlaneseq
    %v143 = vshrl.u32 %v142, 7
    %v144 = vsub.s32 %v141, %v143
    %v145 = vrot.slane %v137, %v144
    %v147 = vunpack.c.l.s4 1966171168
    %v148 = vunpack.c.0.s8 %v147
    %v149 = vlaneseq
    %v150 = vshrl.u32 %v149, 7
    %v151 = vsub.s32 %v148, %v150
    %v152 = vrot.slane %v138, %v151
    %v153 = vcombine.low %v145, %v152
    %156 = vst [vmem:[#allocation5] sm:$0xff] %v108
    %157 = vst [vmem:[#allocation5 + $0x8] sm:$0xff] %v153
    // Predicated region
    $region10: #{tpu_custom_call.1} parent=1 // pred_check
      _
    $region11: #{tpu_custom_call.1} parent=1 // pred_check_branch
      %159 = sbr.rel (0) target = $region13
    $region12: #{tpu_custom_call.1} parent=1 // pred_region
      %s161 = ssub.s32 256, 256
      %162 = vsyncadd [#allocation4], %s161
      %s164 = sshll.u32 [#allocation5], 4
      %s165 = int_to_ptr.vmem [resolvable:$true] %s164
      %167 = dma.vmem_to_hbm [thread:$0]  %s165, 256, %s1, [#allocation4]
    $region13: #{tpu_custom_call.1} parent=1 // pred_fallthru
      _
    // Predicated region
    $region14: #{tpu_custom_call.1} parent=1 // pred_check
      _
    $region15: #{tpu_custom_call.1} parent=1 // pred_check_branch
      %169 = sbr.rel (0) target = $region17
    $region16: #{tpu_custom_call.1} parent=1 // pred_region
      %170 = dma.done [#allocation4], 256
    $region17: #{tpu_custom_call.1} parent=1 // pred_fallthru
      _
    %171 = vsyncpa [#allocation3], 1
    %172 = vsyncpa [#allocation4], 1

</llo_original>
